<compile_context>
chip_gen: v7x
topology: tpu7x:2x2x1
jax: 0.10.0
libtpu: 0.0.40
codegen_flags: <defaults>
</compile_context>

<pallas_src>
import functools

import jax
import jax.numpy as jnp
from jax.experimental import pallas as pl
from jax.experimental.pallas import tpu as pltpu


def _swish_kernel(x_ref, o_ref, *, compute_dtype):
    # swish(x) = x * sigmoid(x); sigmoid via tanh = single EUP op per element.
    x = x_ref[...].astype(compute_dtype)
    half = jnp.asarray(0.5, compute_dtype)
    one = jnp.asarray(1.0, compute_dtype)
    sig = half * (jnp.tanh(half * x) + one)
    o_ref[...] = (x * sig).astype(o_ref.dtype)


def _compute_dtype_for(dtype):
    """Native bf16 compute on chips with bf16 VPU/EUP (v6e/v7x); f32 otherwise."""
    if dtype == jnp.float32:
        return jnp.float32
    if dtype == jnp.bfloat16:
        try:
            kind = jax.devices()[0].device_kind.lower()
        except Exception:
            kind = ""
        if ("v6" in kind) or ("v7" in kind) or ("7x" in kind):
            return jnp.bfloat16
    return jnp.float32  # v5e (no bf16 VPU/EUP), fp8, unknown chips: safe upcast


def _sublane(dtype) -> int:
    # Packed sublane tile: 8 for 32-bit, 16 for bf16/fp16, 32 for int8/fp8.
    return max(8, 32 // jnp.dtype(dtype).itemsize)


def _pick_width(n: int, sublane: int):
    """128-multiple divisor of n; prefer sublane-filled rows, then lane width."""
    candidates = [w for w in range(128, 8192 + 1, 128) if n % w == 0]
    if not candidates:
        return None
    best, best_key = None, None
    for w in candidates:
        rows = n // w
        key = (
            1 if rows % sublane == 0 else 0,  # fully sublane-aligned rows
            1 if rows >= sublane else 0,      # at least one vreg of sublanes filled
            1 if w >= 512 else 0,             # lane-dense stores already at >=512
            w,                                # then widest (fewest grid steps)
        )
        if best_key is None or key > best_key:
            best, best_key = w, key
    return best


def _swish_slab(slab: jax.Array, *, target_block_bytes: int) -> jax.Array:
    """Pallas swish over a 2-D (rows, width) slab, width % 128 == 0."""
    rows, width = slab.shape
    dtype = slab.dtype
    itemsize = jnp.dtype(dtype).itemsize
    sub = _sublane(dtype)

    # Rows per block targeting ~target_block_bytes, rounded to the dtype's
    # packed-sublane multiple (avoids masked/packed partial loads & stores).
    desired = max(sub, (target_block_bytes // (width * itemsize) // sub) * sub)
    if rows <= sub:
        block_rows = rows  # single block; equals full dim so layout rule holds
    else:
        block_rows = min(desired, rows)
        if block_rows >= rows:
            # Force >=2 grid steps so the "parallel" axis can shard across
            # v7x's 2 TensorCores (no-op on single-TC v5e/v6e).
            half = pl.cdiv(rows, 2)
            block_rows = min(rows, max(sub, pl.cdiv(half, sub) * sub))

    grid = (pl.cdiv(rows, block_rows),)
    kernel = functools.partial(_swish_kernel, compute_dtype=_compute_dtype_for(dtype))

    return pl.pallas_call(
        kernel,
        out_shape=jax.ShapeDtypeStruct((rows, width), dtype),
        grid_spec=pltpu.PrefetchScalarGridSpec(
            num_scalar_prefetch=0,
            grid=grid,
            in_specs=[pl.BlockSpec((block_rows, width), lambda i: (i, 0))],
            out_specs=pl.BlockSpec((block_rows, width), lambda i: (i, 0)),
        ),
        compiler_params=pltpu.CompilerParams(
            dimension_semantics=("parallel",),
            # in + out, double-buffered = 4x block bytes (~16 MiB) <= this limit,
            # and well inside v7x's 64 MiB physical VMEM per TC.
            vmem_limit_bytes=32 * 1024 * 1024,
        ),
    )(slab)


def swish(x: jax.Array, *, target_block_bytes: int = 4 * 1024 * 1024) -> jax.Array:
    """Elementwise Swish via Pallas. Any shape; returns same shape/dtype."""
    orig_shape, orig_dtype = x.shape, x.dtype
    n = x.size
    if n == 0:
        return x

    flat = x.reshape(-1)
    sub = _sublane(orig_dtype)
    width = _pick_width(n, sub)

    if width is not None:
        out = _swish_slab(flat.reshape(n // width, width),
                          target_block_bytes=target_block_bytes)
        return out.reshape(orig_shape)

    # Remainder path (n % 128 != 0): largest 128-aligned prefix through the
    # kernel, <128-element tail in plain jnp. Avoids the full-array jnp.pad
    # (an extra full HBM read+write) of the previous version.
    n_main = (n // 128) * 128
    tail = flat[n_main:]
    cdt = _compute_dtype_for(orig_dtype)
    tail_f = tail.astype(cdt)
    tail_out = (tail_f * jax.nn.sigmoid(tail_f)).astype(orig_dtype)
    if n_main == 0:
        return tail_out.reshape(orig_shape)  # tiny tensor: not worth a kernel launch
    head_width = _pick_width(n_main, sub)
    head_out = _swish_slab(flat[:n_main].reshape(n_main // head_width, head_width),
                           target_block_bytes=target_block_bytes).reshape(-1)
    return jnp.concatenate([head_out, tail_out]).reshape(orig_shape)


if __name__ == "__main__":
    key = jax.random.PRNGKey(0)
    x = jax.random.normal(key, (2, 4, 16, 16), dtype=jnp.float32)  # NCHW

    # f32 path
    y = swish(x)
    jax.block_until_ready(y)
    y_ref = x * jax.nn.sigmoid(x)
    assert y.shape == x.shape and y.dtype == x.dtype
    assert jnp.allclose(y, y_ref, atol=1e-6, rtol=1e-5)

    # bf16 path (native bf16 compute on v6e/v7x, f32 upcast elsewhere)
    xb = x.astype(jnp.bfloat16)
    yb = swish(xb)
    jax.block_until_ready(yb)
    yb_ref = (x * jax.nn.sigmoid(x)).astype(jnp.bfloat16)
    assert yb.shape == xb.shape and yb.dtype == jnp.bfloat16
    assert jnp.allclose(yb.astype(jnp.float32), yb_ref.astype(jnp.float32),
                        atol=3e-2, rtol=3e-2)

    # Remainder path (n % 128 != 0): prefix kernel + plain-jnp tail
    xr = jax.random.normal(jax.random.PRNGKey(1), (389,), dtype=jnp.float32)
    yr = swish(xr)
    jax.block_until_ready(yr)
    yr_ref = xr * jax.nn.sigmoid(xr)
    assert yr.shape == xr.shape and jnp.allclose(yr, yr_ref, atol=1e-6, rtol=1e-5)

    print("KERNEL_OK")
</pallas_src>

<mosaic_0001>
module attributes {stable_mosaic.version = 11 : i64} {
  func.func @_swish_kernel(%arg0: i32, %arg1: memref<8x256xf32, #tpu.memory_space<vmem>>, %arg2: memref<8x256xf32, #tpu.memory_space<vmem>>) attributes {dimension_semantics = [#tpu.dimension_semantics<parallel>], iteration_bounds = array<i64: 1>, scalar_prefetch = 0 : i64, scratch_operands = 0 : i64, tpu.core_type = #tpu.core_type<tc>, window_params = [{transform_indices = @transform_0, window_bounds = array<i64: 8, 256>}, {transform_indices = @transform_1, window_bounds = array<i64: 8, 256>}]} {
    %c0 = arith.constant 0 : index
    %c0_0 = arith.constant 0 : index
    %0 = vector.load %arg1[%c0, %c0_0] : memref<8x256xf32, #tpu.memory_space<vmem>>, vector<8x256xf32>
    %cst = arith.constant 5.000000e-01 : f32
    %1 = vector.broadcast %cst : f32 to vector<8x256xf32>
    %2 = arith.mulf %1, %0 : vector<8x256xf32>
    %3 = math.tanh %2 : vector<8x256xf32>
    %cst_1 = arith.constant 1.000000e+00 : f32
    %4 = vector.broadcast %cst_1 : f32 to vector<8x256xf32>
    %5 = arith.addf %3, %4 : vector<8x256xf32>
    %cst_2 = arith.constant 5.000000e-01 : f32
    %6 = vector.broadcast %cst_2 : f32 to vector<8x256xf32>
    %7 = arith.mulf %6, %5 : vector<8x256xf32>
    %8 = arith.mulf %0, %7 : vector<8x256xf32>
    %c0_3 = arith.constant 0 : index
    %c0_4 = arith.constant 0 : index
    %9 = vector.load %arg2[%c0_3, %c0_4] : memref<8x256xf32, #tpu.memory_space<vmem>>, vector<8x256xf32>
    tpu.vector_store %arg2[%c0_3, %c0_4], %8 {strides = array<i32>} : memref<8x256xf32, #tpu.memory_space<vmem>>, vector<8x256xf32>,
    return
  }
  func.func @transform_0(%arg0: i32) -> (i32, i32) {
    %c0_i32 = arith.constant 0 : i32
    %c0_i32_0 = arith.constant 0 : i32
    return %arg0, %c0_i32 : i32, i32
  }
  func.func @transform_1(%arg0: i32) -> (i32, i32) {
    %c0_i32 = arith.constant 0 : i32
    %c0_i32_0 = arith.constant 0 : i32
    return %arg0, %c0_i32 : i32, i32
  }
}

</mosaic_0001>

<llo_original>
// kernel: tpu_custom_call.1
$region0: #{tpu_custom_call.1}
  #allocation0 [shape = 'u32[]', space=smem, size = 0x4, offset = 0x4, fixed_abs, tag = 'smem constant byte address 0x4 - core index']
  #allocation1 [shape = 'u32[144,128]{1,0:T(1,128)}', space=vmem, size = 0x12000, scoped, tag = 'internal scratch']
  %s0 = inlined_call_operand.hbm [shape: f32[8,256], index: 0, kind: input, shape index: {}]
  %s1 = inlined_call_operand.hbm [shape: f32[8,256], index: 1, kind: output, shape index: {}]
  %s2 = sld [smem:[#allocation0]]
  $region18: #{tpu_custom_call.1} parent=0
    _
  %s4 = ssub.s32 1, %s2
  %s5 = scalar_select 0, %s4, %s2
  $region1: #{tpu_custom_call.1} parent=0
    #allocation2 [shape = 'u8[8192]{0}', space=vmem, size = 0x2000, scoped, tag = 'input window, operand 0, single buffered']
    #allocation3 [shape = 's32[1]{0}', space=sflag, size = 0x4, scoped, tag = 'scoped memory for tpu_custom_call.1']
    #allocation4 [shape = 's32[1]{0}', space=sflag, size = 0x4, scoped, tag = 'scoped memory for tpu_custom_call.1']
    #allocation5 [shape = 'u8[8192]{0}', space=vmem, size = 0x2000, scoped, tag = 'output window, operand 0, single buffered']
    %6 = vsyncpa [#allocation3], 0
    %7 = vsyncpa [#allocation4], 0
    // Predicated region
    $region2: #{tpu_custom_call.1} parent=1 // pred_check
      _
    $region3: #{tpu_custom_call.1} parent=1 // pred_check_branch
      %9 = sbr.rel (0) target = $region5
    $region4: #{tpu_custom_call.1} parent=1 // pred_region
      %s11 = ssub.s32 256, 256
      %12 = vsyncadd [#allocation3], %s11
      %s14 = sshll.u32 [#allocation2], 4
      %s15 = int_to_ptr.vmem [resolvable:$true] %s14
      %17 = dma.hbm_to_vmem [thread:$0]  %s0, 256, %s15, [#allocation3]
    $region5: #{tpu_custom_call.1} parent=1 // pred_fallthru
      _
    // Predicated region
    $region6: #{tpu_custom_call.1} parent=1 // pred_check
      _
    $region7: #{tpu_custom_call.1} parent=1 // pred_check_branch
      %19 = sbr.rel (0) target = $region9
    $region8: #{tpu_custom_call.1} parent=1 // pred_region
      %20 = dma.done [#allocation3], 256
    $region9: #{tpu_custom_call.1} parent=1 // pred_fallthru
      _
    %v21 = vld [vmem:[#allocation2] sm:$0xff]
    %v22 = vld [vmem:[#allocation2 + $0x8] sm:$0xff]
    %v23 = vmul.f32 %v21, 0.5
    %v24 = vmul.f32 %v22, 0.5
    %v25 = vtanh.pop %v23
    %v26 = vtanh.pop %v24
    %v27 = vadd.f32 %v25, 1.0
    %v28 = vadd.f32 %v26, 1.0
    %v29 = vmul.f32 %v27, 0.5
    %v30 = vmul.f32 %v28, 0.5
    %v31 = vmul.f32 %v21, %v29
    %v32 = vmul.f32 %v22, %v30
    %33 = vst [vmem:[#allocation5] sm:$0xff] %v31
    %34 = vst [vmem:[#allocation5 + $0x8] sm:$0xff] %v32
    // Predicated region
    $region10: #{tpu_custom_call.1} parent=1 // pred_check
      _
    $region11: #{tpu_custom_call.1} parent=1 // pred_check_branch
      %36 = sbr.rel (0) target = $region13
    $region12: #{tpu_custom_call.1} parent=1 // pred_region
      %s38 = ssub.s32 256, 256
      %39 = vsyncadd [#allocation4], %s38
      %s41 = sshll.u32 [#allocation5], 4
      %s42 = int_to_ptr.vmem [resolvable:$true] %s41
      %44 = dma.vmem_to_hbm [thread:$0]  %s42, 256, %s1, [#allocation4]
    $region13: #{tpu_custom_call.1} parent=1 // pred_fallthru
      _
    // Predicated region
    $region14: #{tpu_custom_call.1} parent=1 // pred_check
      _
    $region15: #{tpu_custom_call.1} parent=1 // pred_check_branch
      %46 = sbr.rel (0) target = $region17
    $region16: #{tpu_custom_call.1} parent=1 // pred_region
      %47 = dma.done [#allocation4], 256
    $region17: #{tpu_custom_call.1} parent=1 // pred_fallthru
      _
    %48 = vsyncpa [#allocation3], 1
    %49 = vsyncpa [#allocation4], 1

</llo_original>
